<compile_context>
chip_gen: v7x
topology: tpu7x:2x2x1
jax: 0.10.0
libtpu: 0.0.40
codegen_flags: <defaults>
</compile_context>

<pallas_src>
import functools

import jax
import jax.numpy as jnp
from jax.experimental import pallas as pl
from jax.experimental.pallas import tpu as pltpu


def _make_kernel(alpha, beta, gamma):
    # alpha/beta/gamma are compile-time Python floats (module stores them as
    # scalar buffers/parameters; non-learnable forward uses fixed values).
    # TODO(synk): if traced (learnable, jit-differentiated) parameters are ever
    # needed, pass them as an SMEM operand instead of baking them in.
    alpha = float(alpha)
    beta = float(beta)
    gamma = float(gamma)

    def kernel(x_ref, o_ref):
        x = x_ref[...].astype(jnp.float32)
        o_ref[...] = (alpha * jnp.abs(x + beta) + gamma).astype(o_ref.dtype)

    return kernel


def _min_sublanes(dtype):
    itemsize = jnp.dtype(dtype).itemsize
    if itemsize >= 4:
        return 8
    if itemsize == 2:
        return 16
    return 32


_LANE_CANDIDATES = (4096, 2048, 1024, 512, 256, 128)


def _device_tuning():
    """Returns (small_path_bytes, target_block_bytes) for the local TPU gen."""
    try:
        kind = jax.devices()[0].device_kind.lower()
    except Exception:  # pragma: no cover - defensive fallback
        kind = ""
    if "v7" in kind:
        # v7x: ~3.2 TB/s HBM -> pipeline sooner; 4 MiB blocks amortize the
        # ~0.35us per-step cost; 16 MiB double-buffered in+out fits the
        # 32 MiB default scoped VMEM (64 MiB physical).
        return 1 * 1024 * 1024, 4 * 1024 * 1024
    if "v5" in kind:
        # v5e: 16 MiB default scoped VMEM -> 2 MiB blocks (8 MiB footprint)
        # already amortize the step cost at ~0.8 TB/s.
        return 2 * 1024 * 1024, 2 * 1024 * 1024
    # v6e and default.
    return 2 * 1024 * 1024, 4 * 1024 * 1024


def parametric_abs(x, alpha=1.0, beta=0.0, gamma=0.0):
    """Apply f(x) = alpha * |x + beta| + gamma elementwise via a Pallas kernel."""
    orig_shape = x.shape
    orig_dtype = x.dtype
    n = x.size
    itemsize = jnp.dtype(orig_dtype).itemsize
    sub = _min_sublanes(orig_dtype)
    small_bytes, target_block_bytes = _device_tuning()

    kernel = _make_kernel(alpha, beta, gamma)

    # Pick the widest lane-dense last dim that divides n while keeping at
    # least one full sublane group of rows (fully packed vregs); fall back to
    # just "divides n", then to 128 + pad.
    lanes = None
    for w in _LANE_CANDIDATES:
        if n % w == 0 and n // w >= sub:
            lanes = w
            break
    if lanes is None:
        for w in _LANE_CANDIDATES:
            if n % w == 0:
                lanes = w
                break
    padded = lanes is None
    if padded:
        lanes = 128

    x_flat = jnp.ravel(x)
    n_pad = pl.cdiv(n, lanes) * lanes
    if n_pad != n:
        x_flat = jnp.pad(x_flat, (0, n_pad - n))
    rows = n_pad // lanes
    x2d = x_flat.reshape(rows, lanes)

    total_bytes = n_pad * itemsize

    if total_bytes <= small_bytes:
        # Small-tensor path: one full-array VMEM block, no grid, no pipeline.
        out2d = pl.pallas_call(
            kernel,
            out_shape=jax.ShapeDtypeStruct((rows, lanes), orig_dtype),
            in_specs=[pl.BlockSpec(memory_space=pltpu.MemorySpace.VMEM)],
            out_specs=pl.BlockSpec(memory_space=pltpu.MemorySpace.VMEM),
        )(x2d)
    else:
        # Large-tensor path: lane-dense blocks, dtype-aware sublane-multiple
        # row counts, default double-buffered pipeline.  No row padding: the
        # ragged last block is masked by Pallas (elementwise -> safe).
        block_rows = (target_block_bytes // (lanes * itemsize)) // sub * sub
        block_rows = max(sub, block_rows)
        block_rows = min(block_rows, rows)
        grid = (pl.cdiv(rows, block_rows),)
        out2d = pl.pallas_call(
            kernel,
            out_shape=jax.ShapeDtypeStruct((rows, lanes), orig_dtype),
            grid=grid,
            in_specs=[pl.BlockSpec((block_rows, lanes), lambda i: (i, 0))],
            out_specs=pl.BlockSpec((block_rows, lanes), lambda i: (i, 0)),
            compiler_params=pltpu.CompilerParams(
                dimension_semantics=("parallel",),
            ),
        )(x2d)

    if padded and n_pad != n:
        return out2d.reshape(-1)[:n].reshape(orig_shape)
    return out2d.reshape(orig_shape)


if __name__ == "__main__":
    key = jax.random.PRNGKey(0)

    # Non-trivial parameter values to exercise the math (module defaults are
    # alpha=1.0, beta=0.0, gamma=0.0).
    alpha, beta, gamma = 1.5, -0.25, 0.1

    # 1) The module's actual small NCHW workload -> small (no-grid) path.
    x = jax.random.normal(key, (2, 4, 16, 16), dtype=jnp.float32)
    out = jax.block_until_ready(parametric_abs(x, alpha=alpha, beta=beta, gamma=gamma))
    ref = alpha * jnp.abs(x + beta) + gamma
    assert out.shape == x.shape and out.dtype == x.dtype
    assert jnp.allclose(out, ref, atol=1e-6, rtol=1e-6)

    # 2) A larger, non-divisible shape -> pipelined path with a ragged final
    #    row-block (validates the masked-boundary write path).
    key2 = jax.random.PRNGKey(1)
    xl = jax.random.normal(key2, (3000, 400), dtype=jnp.float32)
    outl = jax.block_until_ready(parametric_abs(xl, alpha=alpha, beta=beta, gamma=gamma))
    refl = alpha * jnp.abs(xl + beta) + gamma
    assert outl.shape == xl.shape and outl.dtype == xl.dtype
    assert jnp.allclose(outl, refl, atol=1e-6, rtol=1e-6)

    print("KERNEL_OK")
</pallas_src>

<mosaic_0001>
module attributes {stable_mosaic.version = 11 : i64} {
  func.func @kernel(%arg0: memref<8x256xf32, #tpu.memory_space<vmem>>, %arg1: memref<8x256xf32, #tpu.memory_space<vmem>>) attributes {dimension_semantics = [], scalar_prefetch = 0 : i64, scratch_operands = 0 : i64, tpu.core_type = #tpu.core_type<tc>} {
    %c0 = arith.constant 0 : index
    %c0_0 = arith.constant 0 : index
    %0 = vector.load %arg0[%c0, %c0_0] : memref<8x256xf32, #tpu.memory_space<vmem>>, vector<8x256xf32>
    %cst = arith.constant -2.500000e-01 : f32
    %1 = vector.broadcast %cst : f32 to vector<8x256xf32>
    %2 = arith.addf %0, %1 : vector<8x256xf32>
    %3 = math.absf %2 : vector<8x256xf32>
    %cst_1 = arith.constant 1.500000e+00 : f32
    %4 = vector.broadcast %cst_1 : f32 to vector<8x256xf32>
    %5 = arith.mulf %4, %3 : vector<8x256xf32>
    %cst_2 = arith.constant 1.000000e-01 : f32
    %6 = vector.broadcast %cst_2 : f32 to vector<8x256xf32>
    %7 = arith.addf %5, %6 : vector<8x256xf32>
    %c0_3 = arith.constant 0 : index
    %c0_4 = arith.constant 0 : index
    %8 = vector.load %arg1[%c0_3, %c0_4] : memref<8x256xf32, #tpu.memory_space<vmem>>, vector<8x256xf32>
    tpu.vector_store %arg1[%c0_3, %c0_4], %7 {strides = array<i32>} : memref<8x256xf32, #tpu.memory_space<vmem>>, vector<8x256xf32>,
    return
  }
}

</mosaic_0001>

<llo_original>
// kernel: tpu_custom_call.1
$region0: #{tpu_custom_call.1}
  #allocation0 [shape = 'u32[]', space=smem, size = 0x4, offset = 0x4, fixed_abs, tag = 'smem constant byte address 0x4 - core index']
  #allocation1 [shape = 'u32[144,128]{1,0:T(1,128)}', space=vmem, size = 0x12000, scoped, tag = 'internal scratch']
  %s0 = inlined_call_operand.hbm [shape: f32[8,256], index: 0, kind: input, shape index: {}]
  %s1 = inlined_call_operand.hbm [shape: f32[8,256], index: 1, kind: output, shape index: {}]
  %s2 = sld [smem:[#allocation0]]
  $region18: #{tpu_custom_call.1} parent=0
    _
  %s4 = ssub.s32 1, %s2
  %s5 = scalar_select 0, %s4, %s2
  $region1: #{tpu_custom_call.1} parent=0
    #allocation2 [shape = 'u8[8192]{0}', space=vmem, size = 0x2000, scoped, tag = 'input window, operand 0, single buffered']
    #allocation3 [shape = 's32[1]{0}', space=sflag, size = 0x4, scoped, tag = 'scoped memory for tpu_custom_call.1']
    #allocation4 [shape = 's32[1]{0}', space=sflag, size = 0x4, scoped, tag = 'scoped memory for tpu_custom_call.1']
    #allocation5 [shape = 'u8[8192]{0}', space=vmem, size = 0x2000, scoped, tag = 'output window, operand 0, single buffered']
    %6 = vsyncpa [#allocation3], 0
    %7 = vsyncpa [#allocation4], 0
    // Predicated region
    $region2: #{tpu_custom_call.1} parent=1 // pred_check
      _
    $region3: #{tpu_custom_call.1} parent=1 // pred_check_branch
      %9 = sbr.rel (0) target = $region5
    $region4: #{tpu_custom_call.1} parent=1 // pred_region
      %s11 = ssub.s32 256, 256
      %12 = vsyncadd [#allocation3], %s11
      %s14 = sshll.u32 [#allocation2], 4
      %s15 = int_to_ptr.vmem [resolvable:$true] %s14
      %17 = dma.hbm_to_vmem [thread:$0]  %s0, 256, %s15, [#allocation3]
    $region5: #{tpu_custom_call.1} parent=1 // pred_fallthru
      _
    // Predicated region
    $region6: #{tpu_custom_call.1} parent=1 // pred_check
      _
    $region7: #{tpu_custom_call.1} parent=1 // pred_check_branch
      %19 = sbr.rel (0) target = $region9
    $region8: #{tpu_custom_call.1} parent=1 // pred_region
      %20 = dma.done [#allocation3], 256
    $region9: #{tpu_custom_call.1} parent=1 // pred_fallthru
      _
    %v21 = vld [vmem:[#allocation2] sm:$0xff]
    %v22 = vld [vmem:[#allocation2 + $0x8] sm:$0xff]
    %v23 = vadd.f32 %v21, -0.25
    %v24 = vadd.f32 %v22, -0.25
    %v25 = vand.u32 2147483647, %v23
    %v26 = vand.u32 2147483647, %v24
    %v27 = vmul.f32 %v25, 1.5
    %v28 = vmul.f32 %v26, 1.5
    %v29 = vadd.f32 %v27, 0.1
    %v30 = vadd.f32 %v28, 0.1
    %31 = vst [vmem:[#allocation5] sm:$0xff] %v29
    %32 = vst [vmem:[#allocation5 + $0x8] sm:$0xff] %v30
    // Predicated region
    $region10: #{tpu_custom_call.1} parent=1 // pred_check
      _
    $region11: #{tpu_custom_call.1} parent=1 // pred_check_branch
      %34 = sbr.rel (0) target = $region13
    $region12: #{tpu_custom_call.1} parent=1 // pred_region
      %s36 = ssub.s32 256, 256
      %37 = vsyncadd [#allocation4], %s36
      %s39 = sshll.u32 [#allocation5], 4
      %s40 = int_to_ptr.vmem [resolvable:$true] %s39
      %42 = dma.vmem_to_hbm [thread:$0]  %s40, 256, %s1, [#allocation4]
    $region13: #{tpu_custom_call.1} parent=1 // pred_fallthru
      _
    // Predicated region
    $region14: #{tpu_custom_call.1} parent=1 // pred_check
      _
    $region15: #{tpu_custom_call.1} parent=1 // pred_check_branch
      %44 = sbr.rel (0) target = $region17
    $region16: #{tpu_custom_call.1} parent=1 // pred_region
      %45 = dma.done [#allocation4], 256
    $region17: #{tpu_custom_call.1} parent=1 // pred_fallthru
      _
    %46 = vsyncpa [#allocation3], 1
    %47 = vsyncpa [#allocation4], 1

</llo_original>
